<compile_context>
chip_gen: v7x
topology: tpu7x:2x2x1
jax: 0.10.0
libtpu: 0.0.40
codegen_flags: <defaults>
</compile_context>

<pallas_src>
import functools

import jax
import jax.numpy as jnp
from jax.experimental import pallas as pl
from jax.experimental.pallas import tpu as pltpu


def _focal_loss_kernel(logits_ref, targets_ref, alpha_ref, out_ref,
                       acc_ref=None, *, gamma, reduction, use_alpha,
                       B, TB, C, need_mask):
    i = pl.program_id(0)

    logits = logits_ref[...].astype(jnp.float32)                  # (TB, C)
    tgt = targets_ref[...]                                        # (TB, 1) i32

    # one_hot(targets, C) via iota compare
    cls = jax.lax.broadcasted_iota(jnp.int32, (TB, C), 1)
    onehot = (cls == tgt).astype(jnp.float32)                     # (TB, C)

    # per-row log-sum-exp and target logit (lane reduces, XLU)
    m = jnp.max(logits, axis=1, keepdims=True)                    # (TB, 1)
    sum_e = jnp.sum(jnp.exp(logits - m), axis=1, keepdims=True)   # (TB, 1)
    lse = m + jnp.log(sum_e)                                      # (TB, 1)
    logit_t = jnp.sum(onehot * logits, axis=1, keepdims=True)     # (TB, 1)

    p_t = jnp.exp(logit_t - lse)                                  # target prob
    ce_t = -jnp.log(p_t + 1e-9)                # matches torch log(probs + 1e-9)

    if use_alpha:
        alpha = alpha_ref[...]                                    # (1, C)
        alpha_t = jnp.sum(onehot * alpha, axis=1, keepdims=True)  # alpha[tgt]
        ce_t = ce_t * alpha_t

    one_minus_p = 1.0 - p_t
    g = float(gamma)
    if g.is_integer() and g >= 0:
        n = int(g)
        if n == 0:
            focal_w = jnp.ones_like(one_minus_p)
        else:
            focal_w = one_minus_p
            for _ in range(n - 1):                 # pure VPU multiplies
                focal_w = focal_w * one_minus_p
    else:
        focal_w = one_minus_p ** g                 # EUP fallback (non-int gamma)

    loss_row = focal_w * ce_t                                     # (TB, 1)

    if need_mask:
        # zero rows past the real batch size (partial last tile)
        row = i * TB + jax.lax.broadcasted_iota(jnp.int32, (TB, 1), 0)
        loss_row = jnp.where(row < B, loss_row, 0.0)

    if reduction in ('mean', 'sum'):
        @pl.when(i == 0)
        def _():
            acc_ref[0] = jnp.float32(0.0)

        acc_ref[0] = acc_ref[0] + jnp.sum(loss_row)

        @pl.when(i == pl.num_programs(0) - 1)
        def _():
            if reduction == 'mean':
                out_ref[0, 0] = acc_ref[0] / jnp.float32(B * C)
            else:
                out_ref[0, 0] = acc_ref[0]
    else:
        # off-target entries of the torch loss matrix are exactly zero
        out_ref[...] = onehot * loss_row


def focal_loss(logits, targets, gamma=2.0, alpha=None, reduction='mean',
               block_b=None):
    """Pallas-backed equivalent of FocalLoss.forward(logits, targets)."""
    B, C = logits.shape
    use_alpha = alpha is not None
    alpha_arr = (jnp.asarray(alpha, jnp.float32).reshape(1, C)
                 if use_alpha else jnp.zeros((1, C), jnp.float32))
    tgt = targets.reshape(B, 1).astype(jnp.int32)

    # Batch tile: multiple of 8, sized so the double-buffered logits tile plus
    # f32 intermediates stay comfortably under scoped VMEM on every chip
    # (including v7x's 64 MiB per TensorCore).
    if block_b is None:
        per_buffer_budget = 4 * 1024 * 1024                  # bytes / buffer
        tb = max(8, per_buffer_budget // max(1, C * logits.dtype.itemsize))
        tb = min(tb, 1024)
    else:
        tb = int(block_b)
    if tb >= B:
        tb = B                       # block == full dim is always legal
    else:
        tb = max(8, (tb // 8) * 8)
    grid = (pl.cdiv(B, tb),)
    need_mask = (B % tb) != 0

    scalar_red = reduction in ('mean', 'sum')
    if scalar_red:
        out_shape = jax.ShapeDtypeStruct((1, 1), jnp.float32)
        out_specs = pl.BlockSpec((1, 1), lambda i: (0, 0),
                                 memory_space=pltpu.MemorySpace.SMEM)
        scratch_shapes = [pltpu.SMEM((1,), jnp.float32)]
        dims = ("arbitrary",)        # serial scalar accumulation
    else:
        out_shape = jax.ShapeDtypeStruct((B, C), jnp.float32)
        out_specs = pl.BlockSpec((tb, C), lambda i: (i, 0))
        scratch_shapes = []
        dims = ("parallel",)         # shard batch across TCs (v7x)

    itemsize = logits.dtype.itemsize
    out_bytes = 4 if scalar_red else B * C * 4
    cost = pl.CostEstimate(
        flops=10 * B * C,
        transcendentals=B * C + 4 * B,
        bytes_accessed=B * C * itemsize + B * 4 + C * 4 + out_bytes)

    kernel = functools.partial(
        _focal_loss_kernel, gamma=float(gamma), reduction=reduction,
        use_alpha=use_alpha, B=B, TB=tb, C=C, need_mask=need_mask)

    out = pl.pallas_call(
        kernel,
        out_shape=out_shape,
        grid=grid,
        in_specs=[
            pl.BlockSpec((tb, C), lambda i: (i, 0)),   # logits (native dtype)
            pl.BlockSpec((tb, 1), lambda i: (i, 0)),   # targets
            pl.BlockSpec((1, C), lambda i: (0, 0)),    # alpha (resident)
        ],
        out_specs=out_specs,
        scratch_shapes=scratch_shapes,
        compiler_params=pltpu.CompilerParams(
            dimension_semantics=dims,
            vmem_limit_bytes=32 * 1024 * 1024),
        cost_estimate=cost,
    )(logits, tgt, alpha_arr)

    if scalar_red:
        return out[0, 0]
    return out


def focal_loss_ref(logits, targets, gamma=2.0, alpha=None, reduction='mean'):
    """Pure-JAX reference mirroring the PyTorch module exactly."""
    probs = jax.nn.softmax(logits.astype(jnp.float32), axis=1)
    onehot = jax.nn.one_hot(targets, logits.shape[1], dtype=jnp.float32)
    ce = -onehot * jnp.log(probs + 1e-9)
    if alpha is not None:
        ce = ce * jnp.asarray(alpha, jnp.float32)[targets][:, None]
    loss = (1.0 - probs) ** gamma * ce
    if reduction == 'mean':
        return loss.mean()
    if reduction == 'sum':
        return loss.sum()
    return loss


if __name__ == "__main__":
    key = jax.random.PRNGKey(0)
    k1, k2, k3, k4 = jax.random.split(key, 4)

    B, C = 8, 16                          # batch_size, num_classes
    logits = jax.random.normal(k1, (B, C), dtype=jnp.float32)
    targets = jax.random.randint(k2, (B,), 0, C, dtype=jnp.int32)
    # deterministic per-class weights (shape (num_classes,), per __init__)
    alpha = jnp.linspace(0.5, 1.5, C, dtype=jnp.float32)

    # all three reduction modes
    for red in ('mean', 'sum', 'none'):
        out = jax.block_until_ready(
            focal_loss(logits, targets, gamma=2.0, alpha=alpha, reduction=red))
        ref = focal_loss_ref(logits, targets, gamma=2.0, alpha=alpha,
                             reduction=red)
        assert jnp.allclose(out, ref, rtol=1e-4, atol=1e-6), (red, out, ref)

    # exercise the batch grid + partial-tile masking path (40 rows, tile 16)
    B2 = 40
    logits2 = jax.random.normal(k3, (B2, C), dtype=jnp.float32)
    targets2 = jax.random.randint(k4, (B2,), 0, C, dtype=jnp.int32)
    out2 = jax.block_until_ready(
        focal_loss(logits2, targets2, gamma=2.0, alpha=alpha,
                   reduction='mean', block_b=16))
    ref2 = focal_loss_ref(logits2, targets2, gamma=2.0, alpha=alpha,
                          reduction='mean')
    assert jnp.allclose(out2, ref2, rtol=1e-4, atol=1e-6), (out2, ref2)

    # no-alpha path + non-integer gamma fallback
    out3 = jax.block_until_ready(
        focal_loss(logits, targets, gamma=1.5, alpha=None, reduction='sum'))
    ref3 = focal_loss_ref(logits, targets, gamma=1.5, alpha=None,
                          reduction='sum')
    assert jnp.allclose(out3, ref3, rtol=1e-4, atol=1e-6), (out3, ref3)

    print("KERNEL_OK")
</pallas_src>

<mosaic_0001>
module attributes {stable_mosaic.version = 11 : i64} {
  func.func @_focal_loss_kernel(%arg0: i32, %arg1: memref<8x16xf32, #tpu.memory_space<vmem>>, %arg2: memref<8x1xi32, #tpu.memory_space<vmem>>, %arg3: memref<1x16xf32, #tpu.memory_space<vmem>>, %arg4: memref<1x1xf32, #tpu.memory_space<smem>>, %arg5: memref<1xf32, #tpu.memory_space<smem>>) attributes {dimension_semantics = [#tpu.dimension_semantics<arbitrary>], iteration_bounds = array<i64: 1>, scalar_prefetch = 0 : i64, scratch_operands = 1 : i64, tpu.core_type = #tpu.core_type<tc>, window_params = [{transform_indices = @transform_0, window_bounds = array<i64: 8, 16>}, {transform_indices = @transform_1, window_bounds = array<i64: 8, 1>}, {pipeline_mode = #tpu.pipeline_mode<synchronous>, transform_indices = @transform_2, window_bounds = array<i64: 1, 16>}, {transform_indices = @transform_3, window_bounds = array<i64: 1, 1>}]} {
    %c0 = arith.constant 0 : index
    %c0_0 = arith.constant 0 : index
    %0 = vector.load %arg1[%c0, %c0_0] : memref<8x16xf32, #tpu.memory_space<vmem>>, vector<8x16xf32>
    %c0_1 = arith.constant 0 : index
    %c0_2 = arith.constant 0 : index
    %1 = vector.load %arg2[%c0_1, %c0_2] : memref<8x1xi32, #tpu.memory_space<vmem>>, vector<8x1xi32>
    %2 = tpu.iota {dimensions = array<i32: 1>} : vector<8x16xi32>
    %3 = vector.broadcast %1 : vector<8x1xi32> to vector<8x16xi32>
    %4 = arith.cmpi eq, %2, %3 : vector<8x16xi32>
    %5 = arith.extui %4 : vector<8x16xi1> to vector<8x16xi32>
    %6 = arith.sitofp %5 : vector<8x16xi32> to vector<8x16xf32>
    %cst = arith.constant dense<0xFF800000> : vector<8xf32>
    %7 = vector.multi_reduction <maximumf>, %0, %cst [1] : vector<8x16xf32> to vector<8xf32>
    %8 = vector.shape_cast %7 : vector<8xf32> to vector<8x1xf32>
    %9 = vector.broadcast %8 : vector<8x1xf32> to vector<8x16xf32>
    %10 = arith.subf %0, %9 : vector<8x16xf32>
    %11 = math.exp %10 : vector<8x16xf32>
    %cst_3 = arith.constant dense<0.000000e+00> : vector<8xf32>
    %12 = vector.multi_reduction <add>, %11, %cst_3 [1] : vector<8x16xf32> to vector<8xf32>
    %13 = vector.shape_cast %12 : vector<8xf32> to vector<8x1xf32>
    %14 = math.log %13 : vector<8x1xf32>
    %15 = arith.addf %8, %14 : vector<8x1xf32>
    %16 = arith.mulf %6, %0 : vector<8x16xf32>
    %cst_4 = arith.constant dense<0.000000e+00> : vector<8xf32>
    %17 = vector.multi_reduction <add>, %16, %cst_4 [1] : vector<8x16xf32> to vector<8xf32>
    %18 = vector.shape_cast %17 : vector<8xf32> to vector<8x1xf32>
    %19 = arith.subf %18, %15 : vector<8x1xf32>
    %20 = math.exp %19 : vector<8x1xf32>
    %cst_5 = arith.constant 9.99999971E-10 : f32
    %21 = vector.broadcast %cst_5 : f32 to vector<8x1xf32>
    %22 = arith.addf %20, %21 : vector<8x1xf32>
    %23 = math.log %22 : vector<8x1xf32>
    %cst_6 = arith.constant 0.000000e+00 : f32
    %24 = vector.broadcast %cst_6 : f32 to vector<8x1xf32>
    %25 = arith.subf %24, %23 : vector<8x1xf32>
    %c0_7 = arith.constant 0 : index
    %c0_8 = arith.constant 0 : index
    %26 = vector.load %arg3[%c0_7, %c0_8] : memref<1x16xf32, #tpu.memory_space<vmem>>, vector<1x16xf32>
    %27 = vector.broadcast %26 : vector<1x16xf32> to vector<8x16xf32>
    %28 = arith.mulf %6, %27 : vector<8x16xf32>
    %cst_9 = arith.constant dense<0.000000e+00> : vector<8xf32>
    %29 = vector.multi_reduction <add>, %28, %cst_9 [1] : vector<8x16xf32> to vector<8xf32>
    %30 = vector.shape_cast %29 : vector<8xf32> to vector<8x1xf32>
    %31 = arith.mulf %25, %30 : vector<8x1xf32>
    %cst_10 = arith.constant 1.000000e+00 : f32
    %32 = vector.broadcast %cst_10 : f32 to vector<8x1xf32>
    %33 = arith.subf %32, %20 : vector<8x1xf32>
    %34 = arith.mulf %33, %33 : vector<8x1xf32>
    %35 = arith.mulf %34, %31 : vector<8x1xf32>
    %c0_i32 = arith.constant 0 : i32
    %36 = arith.cmpi eq, %arg0, %c0_i32 : i32
    %37 = arith.extui %36 : i1 to i32
    %c0_i32_11 = arith.constant 0 : i32
    %38 = arith.cmpi ne, %37, %c0_i32_11 : i32
    scf.if %38 {
      %cst_17 = arith.constant 0.000000e+00 : f32
      %c0_18 = arith.constant 0 : index
      %49 = memref.load %arg5[%c0_18] : memref<1xf32, #tpu.memory_space<smem>>
      memref.store %cst_17, %arg5[%c0_18] : memref<1xf32, #tpu.memory_space<smem>>
    } else {
    }
    %c0_12 = arith.constant 0 : index
    %39 = memref.load %arg5[%c0_12] : memref<1xf32, #tpu.memory_space<smem>>
    %40 = vector.shape_cast %35 : vector<8x1xf32> to vector<1x8x1xf32>
    %cst_13 = arith.constant dense<0.000000e+00> : vector<1xf32>
    %41 = vector.multi_reduction <add>, %40, %cst_13 [1, 2] : vector<1x8x1xf32> to vector<1xf32>
    %42 = vector.shape_cast %41 : vector<1xf32> to vector<1x1x1xf32>
    %43 = vector.extract %42[0, 0, 0] : f32 from vector<1x1x1xf32>
    %44 = arith.addf %39, %43 : f32
    %c0_14 = arith.constant 0 : index
    %45 = memref.load %arg5[%c0_14] : memref<1xf32, #tpu.memory_space<smem>>
    memref.store %44, %arg5[%c0_14] : memref<1xf32, #tpu.memory_space<smem>>
    %c0_i32_15 = arith.constant 0 : i32
    %46 = arith.cmpi eq, %arg0, %c0_i32_15 : i32
    %47 = arith.extui %46 : i1 to i32
    %c0_i32_16 = arith.constant 0 : i32
    %48 = arith.cmpi ne, %47, %c0_i32_16 : i32
    scf.if %48 {
      %c0_17 = arith.constant 0 : index
      %49 = memref.load %arg5[%c0_17] : memref<1xf32, #tpu.memory_space<smem>>
      %cst_18 = arith.constant 1.280000e+02 : f32
      %50 = arith.divf %49, %cst_18 : f32
      %c0_19 = arith.constant 0 : index
      %c0_20 = arith.constant 0 : index
      %51 = memref.load %arg4[%c0_19, %c0_20] : memref<1x1xf32, #tpu.memory_space<smem>>
      memref.store %50, %arg4[%c0_19, %c0_20] : memref<1x1xf32, #tpu.memory_space<smem>>
    } else {
    }
    return
  }
  func.func @transform_0(%arg0: i32) -> (i32, i32) {
    %c0_i32 = arith.constant 0 : i32
    %c0_i32_0 = arith.constant 0 : i32
    return %arg0, %c0_i32 : i32, i32
  }
  func.func @transform_1(%arg0: i32) -> (i32, i32) {
    %c0_i32 = arith.constant 0 : i32
    %c0_i32_0 = arith.constant 0 : i32
    return %arg0, %c0_i32 : i32, i32
  }
  func.func @transform_2(%arg0: i32) -> (i32, i32) {
    %c0_i32 = arith.constant 0 : i32
    %c0_i32_0 = arith.constant 0 : i32
    %c0_i32_1 = arith.constant 0 : i32
    return %c0_i32, %c0_i32_0 : i32, i32
  }
  func.func @transform_3(%arg0: i32) -> (i32, i32) {
    %c0_i32 = arith.constant 0 : i32
    %c0_i32_0 = arith.constant 0 : i32
    %c0_i32_1 = arith.constant 0 : i32
    return %c0_i32, %c0_i32_0 : i32, i32
  }
}

</mosaic_0001>

<llo_original>
// kernel: tpu_custom_call.1
$region0: #{tpu_custom_call.1}
  #allocation0 [shape = 'u32[]', space=smem, size = 0x4, offset = 0x4, fixed_abs, tag = 'smem constant byte address 0x4 - core index']
  #allocation1 [shape = 'u32[144,128]{1,0:T(1,128)}', space=vmem, size = 0x12000, scoped, tag = 'internal scratch']
  #allocation2 [shape = 'f32[1]{0:T(128)}', space=smem, size = 0x200, scoped, tag = 'scratch operand']
  %s0 = inlined_call_operand.vmem [shape: f32[8,16], index: 0, kind: input, shape index: {}]
  %s1 = inlined_call_operand.vmem [shape: s32[8,1], index: 1, kind: input, shape index: {}]
  %s2 = inlined_call_operand.vmem [shape: f32[1,16], index: 2, kind: input, shape index: {}]
  %s3 = inlined_call_operand.hbm [shape: f32[1,1], index: 3, kind: output, shape index: {}]
  %s4 = sld [smem:[#allocation0]]
  $region30: #{tpu_custom_call.1} parent=0
    _
  %s6 = ssub.s32 1, %s4
  %s7 = scalar_select 0, %s6, %s4
  $region1: #{tpu_custom_call.1} parent=0
    #allocation3 [shape = 'u8[512]{0}', space=smem, size = 0x200, scoped, tag = 'output window, operand 0, single buffered']
    #allocation4 [shape = 's32[1]{0}', space=sflag, size = 0x4, scoped, tag = 'scoped memory for tpu_custom_call.1']
    %8 = vsyncpa [#allocation4], 0
    // Predicated region
    $region2: #{tpu_custom_call.1} parent=1 // pred_check
      _
    $region3: #{tpu_custom_call.1} parent=1 // pred_check_branch
      %10 = sbr.rel (0) target = $region5
    $region4: #{tpu_custom_call.1} parent=1 // pred_region
      _
    $region5: #{tpu_custom_call.1} parent=1 // pred_fallthru
      _
    // Predicated region
    $region6: #{tpu_custom_call.1} parent=1 // pred_check
      _
    $region7: #{tpu_custom_call.1} parent=1 // pred_check_branch
      %12 = sbr.rel (0) target = $region9
    $region8: #{tpu_custom_call.1} parent=1 // pred_region
      _
    $region9: #{tpu_custom_call.1} parent=1 // pred_fallthru
      _
    // Predicated region
    $region10: #{tpu_custom_call.1} parent=1 // pred_check
      _
    $region11: #{tpu_custom_call.1} parent=1 // pred_check_branch
      %14 = sbr.rel (0) target = $region13
    $region12: #{tpu_custom_call.1} parent=1 // pred_region
      _
    $region13: #{tpu_custom_call.1} parent=1 // pred_fallthru
      _
    %v15 = vld [vmem:[%s0] sm:$0xff]
    %v16 = vld [vmem:[%s1] sm:$0xff]
    %v17 = vlaneseq
    %v18 = vand.u32 %v17, 127
    %19 = vset.pattern.permute.xlu0 0
    %20 = vperm.xlu0 %19, %v16
    %v21 = vpop.permute.xlu0 %20
    %vm22 = vcmp.eq.s32.totalorder %v18, %v21
    %v23 = vsel %vm22, 1, 0
    %v24 = vcvt.s32.f32 %v23
    %vm25 = vcmask 130048
    %v26 = vsel %vm25, %v15, -inf
    %27 = vmax.xlane.f32.xlu0 %v26
    %v28 = vpop.xlane.xlu0 %27
    %v29 = vsub.f32 %v15, %v28
    %v30 = vmul.f32 %v29, 1.442695
    %v31 = vpow.pop %v30
    %v32 = vsel %vm25, %v31, 0.0
    %33 = vadd.xlane.f32.xlu0 %v32
    %v34 = vpop.xlane.xlu0 %33
    %v35 = vlog2.pop %v34
    %v36 = vmul.f32 %v35, 0.6931472
    %v37 = vadd.f32 %v28, %v36
    %v38 = vmul.f32 %v24, %v15
    %v39 = vsel %vm25, %v38, 0.0
    %40 = vadd.xlane.f32.xlu0 %v39
    %v41 = vpop.xlane.xlu0 %40
    %v42 = vsub.f32 %v41, %v37
    %v43 = vmul.f32 %v42, 1.442695
    %v44 = vpow.pop %v43
    %v45 = vadd.f32 %v44, 1e-09
    %v46 = vlog2.pop %v45
    %v47 = vmul.f32 %v46, 0.6931472
    %v48 = vsub.f32 0.0, %v47
    %v49 = vld [vmem:[%s2] sm:$0x1]
    %v51 = vlaneseq
    %v52 = vshrl.u32 %v51, 7
    %v53 = vsub.s32 0, %v52
    %v54 = vrot.slane %v49, %v53
    %v56 = vmul.f32 %v24, %v54
    %v57 = vsel %vm25, %v56, 0.0
    %58 = vadd.xlane.f32.xlu0 %v57
    %v59 = vpop.xlane.xlu0 %58
    %v60 = vmul.f32 %v48, %v59
    %v61 = vsub.f32 1.0, %v44
    %v62 = vmul.f32 %v61, %v61
    %v63 = vmul.f32 %v62, %v60
    %p64 = scmp.eq.s32.totalorder 0, 0
    // Predicated region
    $region14: #{tpu_custom_call.1} parent=1 // pred_check
      %p65 = pneg %p64
    $region15: #{tpu_custom_call.1} parent=1 // pred_check_branch
      %67 = sbr.rel (%p65) target = $region17
    $region16: #{tpu_custom_call.1} parent=1 // pred_region
      %s68 = scalar_lea.smem [#allocation2], 0
      %69 = sst [smem:[%s68]] 0.0
    $region17: #{tpu_custom_call.1} parent=1 // pred_fallthru
      _
    %s70 = sld [smem:[#allocation2]]
    %vm71 = vcmask 7168
    %v72 = vsel %vm71, %v63, 0.0
    %73 = vadd.xlane.f32.xlu0 %v72
    %v74 = vpop.xlane.xlu0 %73
    %v75 = vrot.slane %v74, 4
    %v76 = vadd.f32 %v74, %v75
    %v77 = vrot.slane %v76, 2
    %v78 = vadd.f32 %v76, %v77
    %v79 = vrot.slane %v78, 1
    %v80 = vadd.f32 %v78, %v79
    %s81 = vtos %v80
    %s82 = sadd.f32 %s70, %s81
    %s83 = scalar_lea.smem [#allocation2], 0
    %84 = sst [smem:[%s83]] %s82
    // Predicated region
    $region18: #{tpu_custom_call.1} parent=1 // pred_check
      %p85 = pneg %p64
    $region19: #{tpu_custom_call.1} parent=1 // pred_check_branch
      %87 = sbr.rel (%p85) target = $region21
    $region20: #{tpu_custom_call.1} parent=1 // pred_region
      %s88 = sld [smem:[#allocation2]]
      %v89 = vrcp.pop 128.0
      %s90 = vtos %v89
      %s91 = smul.f32 %s88, %s90
      %s92 = scalar_lea.smem [#allocation3], 0
      %93 = sst [smem:[%s92]] %s91
    $region21: #{tpu_custom_call.1} parent=1 // pred_fallthru
      _
    // Predicated region
    $region22: #{tpu_custom_call.1} parent=1 // pred_check
      _
    $region23: #{tpu_custom_call.1} parent=1 // pred_check_branch
      %95 = sbr.rel (0) target = $region25
    $region24: #{tpu_custom_call.1} parent=1 // pred_region
      %s97 = ssub.s32 16, 16
      %98 = vsyncadd [#allocation4], %s97
      %101 = dma.smem_to_hbm [#allocation3], 16, %s3, [#allocation4]
    $region25: #{tpu_custom_call.1} parent=1 // pred_fallthru
      _
    // Predicated region
    $region26: #{tpu_custom_call.1} parent=1 // pred_check
      _
    $region27: #{tpu_custom_call.1} parent=1 // pred_check_branch
      %103 = sbr.rel (0) target = $region29
    $region28: #{tpu_custom_call.1} parent=1 // pred_region
      %104 = dma.done [#allocation4], 16
    $region29: #{tpu_custom_call.1} parent=1 // pred_fallthru
      _
    %105 = sfence
    %106 = vsyncpa [#allocation4], 1

</llo_original>
